<compile_context>
chip_gen: v7x
topology: tpu7x:2x2x1
jax: 0.10.0
libtpu: 0.0.40
codegen_flags: <defaults>
</compile_context>

<pallas_src>
import functools

import jax
import jax.numpy as jnp
from jax.experimental import pallas as pl
from jax.experimental.pallas import tpu as pltpu

HIDDEN_DIM = 128
NEG_SLOPE = 0.01  # PyTorch nn.LeakyReLU default negative_slope
LANE = 128


def _leaky_relu(x):
    # max-form: 2 VPU ops (mul + max) instead of cmp + select + mul.
    return jnp.maximum(x, NEG_SLOPE * x)


def value_net_kernel(x_ref, w1_ref, b1_ref, w2_ref, b2_ref, w3_ref, b3_ref, o_ref):
    """Whole forward pass for one batch tile.

    x_ref:  [bb, obs_dim] f32 (cast to bf16 in-kernel)
    w1_ref: [obs_dim, 128] bf16,  w2_ref: [128, 128] bf16
    b1/b2:  [1, 128] f32,         w3_ref: [1, 128] f32
    b3_ref: [1, 1] f32 in SMEM
    o_ref:  [1, bb // 128, 128] f32 (lane-dense value slab)
    """
    bb = x_ref.shape[0]

    # Layers 1 & 2: bf16 operands on the MXU, f32 accumulation; bias add and
    # LeakyReLU in f32 on the VPU (works on all of v5e/v6e/v7x).
    x = x_ref[...].astype(jnp.bfloat16)
    h1 = jnp.dot(x, w1_ref[...], preferred_element_type=jnp.float32)
    h1 = _leaky_relu(h1 + b1_ref[...])
    h2 = jnp.dot(h1.astype(jnp.bfloat16), w2_ref[...],
                 preferred_element_type=jnp.float32)
    h2 = _leaky_relu(h2 + b2_ref[...])

    # Layer 3 (128 -> 1) on the VPU/XLU: broadcast-multiply by the w3 row and
    # reduce over lanes, emitting a lane-dense (bb // 128, 128) slab where
    # element (g, j) is the value of batch row g*128 + j.
    # If a bundle dump ever shows this sublane->lane relayout on the critical
    # path, the near-idle MXU can absorb layer 3 instead (h2 @ padded 128x128).
    h2g = h2.reshape(bb // LANE, LANE, HIDDEN_DIM)
    val = jnp.sum(h2g * w3_ref[...], axis=-1) + b3_ref[0, 0]
    o_ref[0] = val.astype(o_ref.dtype)


@functools.partial(jax.jit, static_argnames=("block_b",))
def value_net_forward(x, params, block_b=2048):
    """x: [B, obs_dim] float32 -> [B, 1] float32."""
    w1, b1, w2, b2, w3, b3 = params
    B, obs_dim = x.shape

    # Batch tile: multiple of 128 so the output slab is lane-dense.  Clamp to
    # the (lane-rounded) batch and prefer >=2 grid steps so v7x's two
    # TensorCores both get work and the pipeline can overlap DMA with compute.
    block_b = max(LANE, (int(block_b) // LANE) * LANE)
    B_lane = ((B + LANE - 1) // LANE) * LANE
    block_b = min(block_b, B_lane)
    if B_lane // block_b < 2 and B_lane >= 2 * LANE:
        block_b = max(LANE, ((B_lane // 2) // LANE) * LANE)

    num_blocks = pl.cdiv(B, block_b)   # ragged final block handled by Pallas
    gsub = block_b // LANE             # sublane-groups per lane-dense output tile

    # Tiny weight-side casts/reshapes only; x is passed through untouched.
    w1_bf16 = w1.astype(jnp.bfloat16)
    w2_bf16 = w2.astype(jnp.bfloat16)
    w3_row = w3.reshape(1, HIDDEN_DIM).astype(jnp.float32)
    b1_2d = b1.reshape(1, HIDDEN_DIM).astype(jnp.float32)
    b2_2d = b2.reshape(1, HIDDEN_DIM).astype(jnp.float32)
    b3_2d = b3.reshape(1, 1).astype(jnp.float32)

    out = pl.pallas_call(
        value_net_kernel,
        out_shape=jax.ShapeDtypeStruct((num_blocks, gsub, LANE), jnp.float32),
        grid_spec=pltpu.PrefetchScalarGridSpec(
            num_scalar_prefetch=0,
            grid=(num_blocks,),
            in_specs=[
                pl.BlockSpec((block_b, obs_dim), lambda i: (i, 0)),         # x tile (f32)
                pl.BlockSpec((obs_dim, HIDDEN_DIM), lambda i: (0, 0)),      # W1 (bf16), resident
                pl.BlockSpec((1, HIDDEN_DIM), lambda i: (0, 0)),            # b1 (f32)
                pl.BlockSpec((HIDDEN_DIM, HIDDEN_DIM), lambda i: (0, 0)),   # W2 (bf16), resident
                pl.BlockSpec((1, HIDDEN_DIM), lambda i: (0, 0)),            # b2 (f32)
                pl.BlockSpec((1, HIDDEN_DIM), lambda i: (0, 0)),            # W3 row (f32)
                pl.BlockSpec(memory_space=pltpu.MemorySpace.SMEM),          # b3 scalar
            ],
            out_specs=pl.BlockSpec((1, gsub, LANE), lambda i: (i, 0, 0)),
        ),
        compiler_params=pltpu.CompilerParams(
            dimension_semantics=("parallel",),
        ),
    )(x, w1_bf16, b1_2d, w2_bf16, b2_2d, w3_row, b3_2d)

    # Lane-dense slab -> [B, 1]; rows beyond B (ragged final block) are dropped.
    return out.reshape(num_blocks * block_b, 1)[:B]


def init_params(key, obs_dim):
    """Deterministic init mimicking PyTorch Linear default (U(-1/sqrt(fan_in), +))."""
    ks = jax.random.split(key, 6)

    def lin(kw, kb, fan_in, fan_out):
        bound = 1.0 / jnp.sqrt(jnp.float32(fan_in))
        w = jax.random.uniform(kw, (fan_in, fan_out), jnp.float32, -bound, bound)
        b = jax.random.uniform(kb, (1, fan_out), jnp.float32, -bound, bound)
        return w, b

    w1, b1 = lin(ks[0], ks[1], obs_dim, HIDDEN_DIM)
    w2, b2 = lin(ks[2], ks[3], HIDDEN_DIM, HIDDEN_DIM)
    w3, b3 = lin(ks[4], ks[5], HIDDEN_DIM, 1)
    return (w1, b1, w2, b2, w3, b3)


def reference_forward(x, params):
    """Same math, same bf16-operand / f32-accumulate policy, plain XLA ops."""
    w1, b1, w2, b2, w3, b3 = params
    h1 = jnp.dot(x.astype(jnp.bfloat16), w1.astype(jnp.bfloat16),
                 preferred_element_type=jnp.float32) + b1
    h1 = _leaky_relu(h1)
    h2 = jnp.dot(h1.astype(jnp.bfloat16), w2.astype(jnp.bfloat16),
                 preferred_element_type=jnp.float32) + b2
    h2 = _leaky_relu(h2)
    return h2 @ w3 + b3


if __name__ == "__main__":
    key = jax.random.PRNGKey(0)
    k_param, k_x, k_x2 = jax.random.split(key, 3)

    batch, obs_dim = 8, 32
    params = init_params(k_param, obs_dim)

    # Small batch (single ragged block).
    x = jax.random.normal(k_x, (batch, obs_dim), jnp.float32)
    out = jax.block_until_ready(value_net_forward(x, params))
    ref = reference_forward(x, params)
    assert out.shape == (batch, 1), out.shape
    assert jnp.allclose(out, ref, atol=1e-3, rtol=1e-3), (out, ref)

    # Larger ragged batch (multiple grid steps + partial final block).
    batch2 = 300
    x2 = jax.random.normal(k_x2, (batch2, obs_dim), jnp.float32)
    out2 = jax.block_until_ready(value_net_forward(x2, params))
    ref2 = reference_forward(x2, params)
    assert out2.shape == (batch2, 1), out2.shape
    assert jnp.allclose(out2, ref2, atol=1e-3, rtol=1e-3)

    print("KERNEL_OK")
</pallas_src>

<mosaic_0001>
module attributes {stable_mosaic.version = 11 : i64} {
  func.func @value_net_kernel(%arg0: i32, %arg1: memref<128x32xf32, #tpu.memory_space<vmem>>, %arg2: memref<32x128xbf16, #tpu.memory_space<vmem>>, %arg3: memref<1x128xf32, #tpu.memory_space<vmem>>, %arg4: memref<128x128xbf16, #tpu.memory_space<vmem>>, %arg5: memref<1x128xf32, #tpu.memory_space<vmem>>, %arg6: memref<1x128xf32, #tpu.memory_space<vmem>>, %arg7: memref<1x1xf32, #tpu.memory_space<smem>>, %arg8: memref<1x1x128xf32, #tpu.memory_space<vmem>>) attributes {dimension_semantics = [#tpu.dimension_semantics<parallel>], iteration_bounds = array<i64: 1>, scalar_prefetch = 0 : i64, scratch_operands = 0 : i64, tpu.core_type = #tpu.core_type<tc>, window_params = [{transform_indices = @transform_0, window_bounds = array<i64: 128, 32>}, {pipeline_mode = #tpu.pipeline_mode<synchronous>, transform_indices = @transform_1, window_bounds = array<i64: 32, 128>}, {pipeline_mode = #tpu.pipeline_mode<synchronous>, transform_indices = @transform_2, window_bounds = array<i64: 1, 128>}, {pipeline_mode = #tpu.pipeline_mode<synchronous>, transform_indices = @transform_3, window_bounds = array<i64: 128, 128>}, {pipeline_mode = #tpu.pipeline_mode<synchronous>, transform_indices = @transform_4, window_bounds = array<i64: 1, 128>}, {pipeline_mode = #tpu.pipeline_mode<synchronous>, transform_indices = @transform_5, window_bounds = array<i64: 1, 128>}, {transform_indices = @transform_6, window_bounds = array<i64: 1, 1>}, {transform_indices = @transform_7, window_bounds = array<i64: 1, 1, 128>}]} {
    %c0 = arith.constant 0 : index
    %c0_0 = arith.constant 0 : index
    %0 = vector.load %arg1[%c0, %c0_0] : memref<128x32xf32, #tpu.memory_space<vmem>>, vector<128x32xf32>
    %1 = arith.truncf %0 : vector<128x32xf32> to vector<128x32xbf16>
    %c0_1 = arith.constant 0 : index
    %c0_2 = arith.constant 0 : index
    %2 = vector.load %arg2[%c0_1, %c0_2] : memref<32x128xbf16, #tpu.memory_space<vmem>>, vector<32x128xbf16>
    %cst = arith.constant dense<0.000000e+00> : vector<128x128xf32>
    %3 = tpu.matmul %1, %2, %cst {dimension_numbers = #tpu.dot_dimension_numbers<[1], [0], [0], [1], [0, 0, 1, 1], [], []>} : vector<128x32xbf16>, vector<32x128xbf16>, vector<128x128xf32> -> vector<128x128xf32>
    %c0_3 = arith.constant 0 : index
    %c0_4 = arith.constant 0 : index
    %4 = vector.load %arg3[%c0_3, %c0_4] : memref<1x128xf32, #tpu.memory_space<vmem>>, vector<1x128xf32>
    %5 = vector.broadcast %4 : vector<1x128xf32> to vector<128x128xf32>
    %6 = arith.addf %3, %5 : vector<128x128xf32>
    %cst_5 = arith.constant 0.00999999977 : f32
    %7 = vector.broadcast %cst_5 : f32 to vector<128x128xf32>
    %8 = arith.mulf %7, %6 : vector<128x128xf32>
    %9 = arith.maximumf %6, %8 : vector<128x128xf32>
    %10 = arith.truncf %9 : vector<128x128xf32> to vector<128x128xbf16>
    %c0_6 = arith.constant 0 : index
    %c0_7 = arith.constant 0 : index
    %11 = vector.load %arg4[%c0_6, %c0_7] : memref<128x128xbf16, #tpu.memory_space<vmem>>, vector<128x128xbf16>
    %cst_8 = arith.constant dense<0.000000e+00> : vector<128x128xf32>
    %12 = tpu.matmul %10, %11, %cst_8 {dimension_numbers = #tpu.dot_dimension_numbers<[1], [0], [0], [1], [0, 0, 1, 1], [], []>} : vector<128x128xbf16>, vector<128x128xbf16>, vector<128x128xf32> -> vector<128x128xf32>
    %c0_9 = arith.constant 0 : index
    %c0_10 = arith.constant 0 : index
    %13 = vector.load %arg5[%c0_9, %c0_10] : memref<1x128xf32, #tpu.memory_space<vmem>>, vector<1x128xf32>
    %14 = vector.broadcast %13 : vector<1x128xf32> to vector<128x128xf32>
    %15 = arith.addf %12, %14 : vector<128x128xf32>
    %cst_11 = arith.constant 0.00999999977 : f32
    %16 = vector.broadcast %cst_11 : f32 to vector<128x128xf32>
    %17 = arith.mulf %16, %15 : vector<128x128xf32>
    %18 = arith.maximumf %15, %17 : vector<128x128xf32>
    %19 = vector.shape_cast %18 : vector<128x128xf32> to vector<1x128x128xf32>
    %c0_12 = arith.constant 0 : index
    %c0_13 = arith.constant 0 : index
    %20 = vector.load %arg6[%c0_12, %c0_13] : memref<1x128xf32, #tpu.memory_space<vmem>>, vector<1x128xf32>
    %21 = vector.shape_cast %20 : vector<1x128xf32> to vector<1x1x128xf32>
    %22 = vector.broadcast %21 : vector<1x1x128xf32> to vector<1x128x128xf32>
    %23 = arith.mulf %19, %22 : vector<1x128x128xf32>
    %cst_14 = arith.constant dense<0.000000e+00> : vector<1x128xf32>
    %24 = vector.multi_reduction <add>, %23, %cst_14 [2] : vector<1x128x128xf32> to vector<1x128xf32>
    %c0_15 = arith.constant 0 : index
    %c0_16 = arith.constant 0 : index
    %25 = memref.load %arg7[%c0_15, %c0_16] : memref<1x1xf32, #tpu.memory_space<smem>>
    %26 = vector.broadcast %25 : f32 to vector<1x128xf32>
    %27 = arith.addf %24, %26 : vector<1x128xf32>
    %c0_17 = arith.constant 0 : index
    %c0_18 = arith.constant 0 : index
    %c0_19 = arith.constant 0 : index
    %28 = vector.load %arg8[%c0_17, %c0_18, %c0_19] : memref<1x1x128xf32, #tpu.memory_space<vmem>>, vector<1x1x128xf32>
    %29 = vector.shape_cast %28 : vector<1x1x128xf32> to vector<1x128xf32>
    %30 = vector.shape_cast %27 : vector<1x128xf32> to vector<1x1x128xf32>
    tpu.vector_store %arg8[%c0_17, %c0_18, %c0_19], %30 {strides = array<i32>} : memref<1x1x128xf32, #tpu.memory_space<vmem>>, vector<1x1x128xf32>,
    return
  }
  func.func @transform_0(%arg0: i32) -> (i32, i32) {
    %c0_i32 = arith.constant 0 : i32
    %c0_i32_0 = arith.constant 0 : i32
    return %arg0, %c0_i32 : i32, i32
  }
  func.func @transform_1(%arg0: i32) -> (i32, i32) {
    %c0_i32 = arith.constant 0 : i32
    %c0_i32_0 = arith.constant 0 : i32
    %c0_i32_1 = arith.constant 0 : i32
    return %c0_i32, %c0_i32_0 : i32, i32
  }
  func.func @transform_2(%arg0: i32) -> (i32, i32) {
    %c0_i32 = arith.constant 0 : i32
    %c0_i32_0 = arith.constant 0 : i32
    %c0_i32_1 = arith.constant 0 : i32
    return %c0_i32, %c0_i32_0 : i32, i32
  }
  func.func @transform_3(%arg0: i32) -> (i32, i32) {
    %c0_i32 = arith.constant 0 : i32
    %c0_i32_0 = arith.constant 0 : i32
    %c0_i32_1 = arith.constant 0 : i32
    return %c0_i32, %c0_i32_0 : i32, i32
  }
  func.func @transform_4(%arg0: i32) -> (i32, i32) {
    %c0_i32 = arith.constant 0 : i32
    %c0_i32_0 = arith.constant 0 : i32
    %c0_i32_1 = arith.constant 0 : i32
    return %c0_i32, %c0_i32_0 : i32, i32
  }
  func.func @transform_5(%arg0: i32) -> (i32, i32) {
    %c0_i32 = arith.constant 0 : i32
    %c0_i32_0 = arith.constant 0 : i32
    %c0_i32_1 = arith.constant 0 : i32
    return %c0_i32, %c0_i32_0 : i32, i32
  }
  func.func @transform_6(%arg0: i32) -> (i32, i32) {
    %c0_i32 = arith.constant 0 : i32
    %c0_i32_0 = arith.constant 0 : i32
    %c0_i32_1 = arith.constant 0 : i32
    return %c0_i32, %c0_i32_0 : i32, i32
  }
  func.func @transform_7(%arg0: i32) -> (i32, i32, i32) {
    %c0_i32 = arith.constant 0 : i32
    %c0_i32_0 = arith.constant 0 : i32
    %c0_i32_1 = arith.constant 0 : i32
    return %arg0, %c0_i32, %c0_i32_0 : i32, i32, i32
  }
}

</mosaic_0001>

<llo_original>
// kernel: value_net_forward.1
$region0: #{value_net_forward.1}
  #allocation0 [shape = 'u32[]', space=smem, size = 0x4, offset = 0x4, fixed_abs, tag = 'smem constant byte address 0x4 - core index']
  #allocation1 [shape = 'u32[144,128]{1,0:T(1,128)}', space=vmem, size = 0x12000, scoped, tag = 'internal scratch']
  #allocation2 [shape = 'f32[1,1]{1,0:T(1,128)S(6)}', space=smem, size = 0x200, scoped, tag = 'scoped memory for value_net_forward.1']
  %s0 = inlined_call_operand.vmem [shape: f32[8,32], index: 0, kind: input, shape index: {}]
  %s1 = inlined_call_operand.vmem [shape: bf16[32,128], index: 1, kind: input, shape index: {}]
  %s2 = inlined_call_operand.vmem [shape: f32[1,128], index: 2, kind: input, shape index: {}]
  %s3 = inlined_call_operand.vmem [shape: bf16[128,128], index: 3, kind: input, shape index: {}]
  %s4 = inlined_call_operand.vmem [shape: f32[1,128], index: 4, kind: input, shape index: {}]
  %s5 = inlined_call_operand.vmem [shape: f32[1,128], index: 5, kind: input, shape index: {}]
  %s6 = inlined_call_operand.<no memory space> [shape: f32[1,1], index: 6, kind: input, shape index: {}]
  %s7 = inlined_call_operand.vmem [shape: f32[1,1,128], index: 7, kind: output, shape index: {}]
  %s8 = sld [smem:[#allocation0]]
  $region38: #{value_net_forward.1} parent=0
    _
  %s10 = ssub.s32 1, %s8
  %s11 = scalar_select 0, %s10, %s8
  %12 = sst [smem:[#allocation2]] %s6
  // Predicated region
  $region2: #{value_net_forward.1} parent=0 // pred_check
    _
  $region3: #{value_net_forward.1} parent=0 // pred_check_branch
    %14 = sbr.rel (0) target = $region5
  $region4: #{value_net_forward.1} parent=0 // pred_region
    _
  $region5: #{value_net_forward.1} parent=0 // pred_fallthru
    _
  // Predicated region
  $region6: #{value_net_forward.1} parent=0 // pred_check
    _
  $region7: #{value_net_forward.1} parent=0 // pred_check_branch
    %16 = sbr.rel (0) target = $region9
  $region8: #{value_net_forward.1} parent=0 // pred_region
    _
  $region9: #{value_net_forward.1} parent=0 // pred_fallthru
    _
  // Predicated region
  $region10: #{value_net_forward.1} parent=0 // pred_check
    _
  $region11: #{value_net_forward.1} parent=0 // pred_check_branch
    %18 = sbr.rel (0) target = $region13
  $region12: #{value_net_forward.1} parent=0 // pred_region
    _
  $region13: #{value_net_forward.1} parent=0 // pred_fallthru
    _
  // Predicated region
  $region14: #{value_net_forward.1} parent=0 // pred_check
    _
  $region15: #{value_net_forward.1} parent=0 // pred_check_branch
    %20 = sbr.rel (0) target = $region17
  $region16: #{value_net_forward.1} parent=0 // pred_region
    _
  $region17: #{value_net_forward.1} parent=0 // pred_fallthru
    _
  // Predicated region
  $region18: #{value_net_forward.1} parent=0 // pred_check
    _
  $region19: #{value_net_forward.1} parent=0 // pred_check_branch
    %22 = sbr.rel (0) target = $region21
  $region20: #{value_net_forward.1} parent=0 // pred_region
    _
  $region21: #{value_net_forward.1} parent=0 // pred_fallthru
    _
  // Predicated region
  $region22: #{value_net_forward.1} parent=0 // pred_check
    _
  $region23: #{value_net_forward.1} parent=0 // pred_check_branch
    %24 = sbr.rel (0) target = $region25
  $region24: #{value_net_forward.1} parent=0 // pred_region
    _
  $region25: #{value_net_forward.1} parent=0 // pred_fallthru
    _
  // Predicated region
  $region26: #{value_net_forward.1} parent=0 // pred_check
    _
  $region27: #{value_net_forward.1} parent=0 // pred_check_branch
    %26 = sbr.rel (0) target = $region29
  $region28: #{value_net_forward.1} parent=0 // pred_region
    _
  $region29: #{value_net_forward.1} parent=0 // pred_fallthru
    _
  %v28 = vld [vmem:[%s0] sm:$0xff]
  %v29 = vld [vmem:[%s0 + $0x8] sm:$0xff]
  %v30 = vld [vmem:[%s0 + $0x10] sm:$0xff]
  %v31 = vld [vmem:[%s0 + $0x18] sm:$0xff]
  %v32 = vld [vmem:[%s0 + $0x20] sm:$0xff]
  %v33 = vld [vmem:[%s0 + $0x28] sm:$0xff]
  %v34 = vld [vmem:[%s0 + $0x30] sm:$0xff]
  %v35 = vld [vmem:[%s0 + $0x38] sm:$0xff]
  %v36 = vld [vmem:[%s0 + $0x40] sm:$0xff]
  %v37 = vld [vmem:[%s0 + $0x48] sm:$0xff]
  %v38 = vld [vmem:[%s0 + $0x50] sm:$0xff]
  %v39 = vld [vmem:[%s0 + $0x58] sm:$0xff]
  %v40 = vld [vmem:[%s0 + $0x60] sm:$0xff]
  %v41 = vld [vmem:[%s0 + $0x68] sm:$0xff]
  %v42 = vld [vmem:[%s0 + $0x70] sm:$0xff]
  %v43 = vld [vmem:[%s0 + $0x78] sm:$0xff]
  %v44 = vpack.c.bf16 %v29, %v28
  %v45 = vpack.c.bf16 %v31, %v30
  %v46 = vpack.c.bf16 %v33, %v32
  %v47 = vpack.c.bf16 %v35, %v34
  %v48 = vpack.c.bf16 %v37, %v36
  %v49 = vpack.c.bf16 %v39, %v38
  %v50 = vpack.c.bf16 %v41, %v40
  %v51 = vpack.c.bf16 %v43, %v42
  %v52 = vld [vmem:[%s1] sm:$0xf]
  %v53 = vld [vmem:[%s1 + $0x4] sm:$0xf]
  %v54 = vld [vmem:[%s1 + $0x8] sm:$0xf]
  %v55 = vld [vmem:[%s1 + $0xc] sm:$0xf]
  %v56 = vld [vmem:[%s2] sm:$0x1]
  %v58 = vlaneseq
  %v59 = vshrl.u32 %v58, 7
  %v60 = vsub.s32 0, %v59
  %v61 = vrot.slane %v56, %v60
  %v67 = vunpack.c.l.b16 %v52
  %v68 = vunpack.c.l.b16 %v53
  %v69 = vunpack.c.l.b16 %v54
  %v70 = vunpack.c.l.b16 %v55
  %v71 = vpack.c.b16 %v68, %v67
  %v72 = vpack.c.b16 %v70, %v69
  %vm75 = vcmask 261120
  %v77 = vsel %vm75, %v44, 0
  %v80 = vsel %vm75, %v45, 0
  %v83 = vsel %vm75, %v46, 0
  %v86 = vsel %vm75, %v47, 0
  %v89 = vsel %vm75, %v48, 0
  %v92 = vsel %vm75, %v49, 0
  %v95 = vsel %vm75, %v50, 0
  %v98 = vsel %vm75, %v51, 0
  %100 = vmatprep.subr.bf16.mxu0 0
  %101 = vmatpush1.bf16.msra.mxu0 %v71
  %102 = vmatprep.subr.bf16.mxu0 0
  %103 = vmatpush1.bf16.msra.mxu0 %v72
  %104 = vmatprep.subr.bf16.mxu0 0
  %105 = vmatpush1.bf16.msra.mxu0 0
  %106 = vmatprep.subr.bf16.mxu0 0
  %107 = vmatpush1.bf16.msra.mxu0 0
  %108 = vmatprep.subr.bf16.mxu0 0
  %109 = vmatpush1.bf16.msra.mxu0 0
  %110 = vmatprep.subr.bf16.mxu0 0
  %111 = vmatpush1.bf16.msra.mxu0 0
  %112 = vmatprep.subr.bf16.mxu0 0
  %113 = vmatpush1.bf16.msra.mxu0 0
  %114 = vmatprep.subr.bf16.mxu0 0
  %115 = vmatpush1.bf16.msra.mxu0 0
  %116 = vmatprep.subr.bf16.mxu0 0
  %117 = vmatpush1.bf16.msra.mxu0 0
  %118 = vmatprep.subr.bf16.mxu0 0
  %119 = vmatpush1.bf16.msra.mxu0 0
  %120 = vmatprep.subr.bf16.mxu0 0
  %121 = vmatpush1.bf16.msra.mxu0 0
  %122 = vmatprep.subr.bf16.mxu0 0
  %123 = vmatpush1.bf16.msra.mxu0 0
  %124 = vmatprep.subr.bf16.mxu0 0
  %125 = vmatpush1.bf16.msra.mxu0 0
  %126 = vmatprep.subr.bf16.mxu0 0
  %127 = vmatpush1.bf16.msra.mxu0 0
  %128 = vmatprep.subr.bf16.mxu0 0
  %129 = vmatpush1.bf16.msra.mxu0 0
  %130 = vmatprep.subr.bf16.mxu0 0
  %131 = vmatpush1.bf16.msra.mxu0 0
  %132 = vmatprep.mubr.bf16.mxu0 0
  %133 = vmatmul.mubr.bf16.gmra.mrb[0].mxu0 %v77
  %v134 = vpop.f32.mrb[0].mxu0
  %v135 = vadd.f32 %v61, %v134
  %v136 = vpop.f32.mrb[0].mxu0
  %v137 = vpop.f32.mrb[0].mxu0
  %v138 = vadd.f32 %v61, %v137
  %v139 = vpop.f32.mrb[0].mxu0
  %140 = vmatprep.mubr.bf16.mxu0 0
  %141 = vmatmul.mubr.bf16.gmra.mrb[0].mxu0 %v80
  %v142 = vpop.f32.mrb[0].mxu0
  %v143 = vadd.f32 %v61, %v142
  %v144 = vpop.f32.mrb[0].mxu0
  %v145 = vpop.f32.mrb[0].mxu0
  %v146 = vadd.f32 %v61, %v145
  %v147 = vpop.f32.mrb[0].mxu0
  %148 = vmatprep.mubr.bf16.mxu0 0
  %149 = vmatmul.mubr.bf16.gmra.mrb[0].mxu0 %v83
  %v150 = vpop.f32.mrb[0].mxu0
  %v151 = vadd.f32 %v61, %v150
  %v152 = vpop.f32.mrb[0].mxu0
  %v153 = vpop.f32.mrb[0].mxu0
  %v154 = vadd.f32 %v61, %v153
  %v155 = vpop.f32.mrb[0].mxu0
  %156 = vmatprep.mubr.bf16.mxu0 0
  %157 = vmatmul.mubr.bf16.gmra.mrb[0].mxu0 %v86
  %v158 = vpop.f32.mrb[0].mxu0
  %v159 = vadd.f32 %v61, %v158
  %v160 = vpop.f32.mrb[0].mxu0
  %v161 = vpop.f32.mrb[0].mxu0
  %v162 = vadd.f32 %v61, %v161
  %v163 = vpop.f32.mrb[0].mxu0
  %164 = vmatprep.mubr.bf16.mxu0 0
  %165 = vmatmul.mubr.bf16.gmra.mrb[0].mxu0 %v89
  %v166 = vpop.f32.mrb[0].mxu0
  %v167 = vadd.f32 %v61, %v166
  %v168 = vpop.f32.mrb[0].mxu0
  %v169 = vpop.f32.mrb[0].mxu0
  %v170 = vadd.f32 %v61, %v169
  %v171 = vpop.f32.mrb[0].mxu0
  %172 = vmatprep.mubr.bf16.mxu0 0
  %173 = vmatmul.mubr.bf16.gmra.mrb[0].mxu0 %v92
  %v174 = vpop.f32.mrb[0].mxu0
  %v175 = vadd.f32 %v61, %v174
  %v176 = vpop.f32.mrb[0].mxu0
  %v177 = vpop.f32.mrb[0].mxu0
  %v178 = vadd.f32 %v61, %v177
  %v179 = vpop.f32.mrb[0].mxu0
  %180 = vmatprep.mubr.bf16.mxu0 0
  %181 = vmatmul.mubr.bf16.gmra.mrb[0].mxu0 %v95
  %v182 = vpop.f32.mrb[0].mxu0
  %v183 = vadd.f32 %v61, %v182
  %v184 = vpop.f32.mrb[0].mxu0
  %v185 = vpop.f32.mrb[0].mxu0
  %v186 = vadd.f32 %v61, %v185
  %v187 = vpop.f32.mrb[0].mxu0
  %188 = vmatprep.mubr.bf16.mxu0 0
  %189 = vmatmul.mubr.bf16.gmra.mrb[0].mxu0 %v98
  %v190 = vpop.f32.mrb[0].mxu0
  %v191 = vadd.f32 %v61, %v190
  %v192 = vpop.f32.mrb[0].mxu0
  %v193 = vpop.f32.mrb[0].mxu0
  %v194 = vadd.f32 %v61, %v193
  %v195 = vpop.f32.mrb[0].mxu0
  %196 = vdwg.mxu0
  %v197 = vmul.f32 %v135, 0.01
  %v198 = vmul.f32 %v138, 0.01
  %v199 = vmul.f32 %v143, 0.01
  %v200 = vmul.f32 %v146, 0.01
  %v201 = vmul.f32 %v151, 0.01
  %v202 = vmul.f32 %v154, 0.01
  %v203 = vmul.f32 %v159, 0.01
  %v204 = vmul.f32 %v162, 0.01
  %v205 = vmul.f32 %v167, 0.01
  %v206 = vmul.f32 %v170, 0.01
  %v207 = vmul.f32 %v175, 0.01
  %v208 = vmul.f32 %v178, 0.01
  %v209 = vmul.f32 %v183, 0.01
  %v210 = vmul.f32 %v186, 0.01
  %v211 = vmul.f32 %v191, 0.01
  %v212 = vmul.f32 %v194, 0.01
  %v213 = vmax.f32 %v135, %v197
  %v214 = vmax.f32 %v138, %v198
  %v215 = vmax.f32 %v143, %v199
  %v216 = vmax.f32 %v146, %v200
  %v217 = vmax.f32 %v151, %v201
  %v218 = vmax.f32 %v154, %v202
  %v219 = vmax.f32 %v159, %v203
  %v220 = vmax.f32 %v162, %v204
  %v221 = vmax.f32 %v167, %v205
  %v222 = vmax.f32 %v170, %v206
  %v223 = vmax.f32 %v175, %v207
  %v224 = vmax.f32 %v178, %v208
  %v225 = vmax.f32 %v183, %v209
  %v226 = vmax.f32 %v186, %v210
  %v227 = vmax.f32 %v191, %v211
  %v228 = vmax.f32 %v194, %v212
  %v229 = vpack.c.bf16 %v214, %v213
  %v230 = vpack.c.bf16 %v216, %v215
  %v231 = vpack.c.bf16 %v218, %v217
  %v232 = vpack.c.bf16 %v220, %v219
  %v233 = vpack.c.bf16 %v222, %v221
  %v234 = vpack.c.bf16 %v224, %v223
  %v235 = vpack.c.bf16 %v226, %v225
  %v236 = vpack.c.bf16 %v228, %v227
  %v237 = vld [vmem:[%s3] sm:$0xf]
  %v238 = vld [vmem:[%s3 + $0x4] sm:$0xf]
  %v239 = vld [vmem:[%s3 + $0x8] sm:$0xf]
  %v240 = vld [vmem:[%s3 + $0xc] sm:$0xf]
  %v241 = vld [vmem:[%s3 + $0x10] sm:$0xf]
  %v242 = vld [vmem:[%s3 + $0x14] sm:$0xf]
  %v243 = vld [vmem:[%s3 + $0x18] sm:$0xf]
  %v244 = vld [vmem:[%s3 + $0x1c] sm:$0xf]
  %v245 = vld [vmem:[%s3 + $0x20] sm:$0xf]
  %v246 = vld [vmem:[%s3 + $0x24] sm:$0xf]
  %v247 = vld [vmem:[%s3 + $0x28] sm:$0xf]
  %v248 = vld [vmem:[%s3 + $0x2c] sm:$0xf]
  %v249 = vld [vmem:[%s3 + $0x30] sm:$0xf]
  %v250 = vld [vmem:[%s3 + $0x34] sm:$0xf]
  %v251 = vld [vmem:[%s3 + $0x38] sm:$0xf]
  %v252 = vld [vmem:[%s3 + $0x3c] sm:$0xf]
  %v253 = vld [vmem:[%s4] sm:$0x1]
  %v255 = vlaneseq
  %v256 = vshrl.u32 %v255, 7
  %v257 = vsub.s32 0, %v256
  %v258 = vrot.slane %v253, %v257
  %v276 = vunpack.c.l.b16 %v237
  %v277 = vunpack.c.l.b16 %v238
  %v278 = vunpack.c.l.b16 %v239
  %v279 = vunpack.c.l.b16 %v240
  %v280 = vunpack.c.l.b16 %v241
  %v281 = vunpack.c.l.b16 %v242
  %v282 = vunpack.c.l.b16 %v243
  %v283 = vunpack.c.l.b16 %v244
  %v284 = vunpack.c.l.b16 %v245
  %v285 = vunpack.c.l.b16 %v246
  %v286 = vunpack.c.l.b16 %v247
  %v287 = vunpack.c.l.b16 %v248
  %v288 = vunpack.c.l.b16 %v249
  %v289 = vunpack.c.l.b16 %v250
  %v290 = vunpack.c.l.b16 %v251
  %v291 = vunpack.c.l.b16 %v252
  %v292 = vpack.c.b16 %v277, %v276
  %v293 = vpack.c.b16 %v279, %v278
  %v294 = vpack.c.b16 %v281, %v280
  %v295 = vpack.c.b16 %v283, %v282
  %v296 = vpack.c.b16 %v285, %v284
  %v297 = vpack.c.b16 %v287, %v286
  %v298 = vpack.c.b16 %v289, %v288
  %v299 = vpack.c.b16 %v291, %v290
  %308 = vmatprep.subr.bf16.mxu0 0
  %309 = vmatpush1.bf16.msra.mxu0 %v292
  %310 = vmatprep.subr.bf16.mxu0 0
  %311 = vmatpush1.bf16.msra.mxu0 %v293
  %312 = vmatprep.subr.bf16.mxu0 0
  %313 = vmatpush1.bf16.msra.mxu0 %v294
  %314 = vmatprep.subr.bf16.mxu0 0
  %315 = vmatpush1.bf16.msra.mxu0 %v295
  %316 = vmatprep.subr.bf16.mxu0 0
  %317 = vmatpush1.bf16.msra.mxu0 %v296
  %318 = vmatprep.subr.bf16.mxu0 0
  %319 = vmatpush1.bf16.msra.mxu0 %v297
  %320 = vmatprep.subr.bf16.mxu0 0
  %321 = vmatpush1.bf16.msra.mxu0 %v298
  %322 = vmatprep.subr.bf16.mxu0 0
  %323 = vmatpush1.bf16.msra.mxu0 %v299
  %324 = vmatprep.subr.bf16.mxu0 0
  %325 = vmatpush1.bf16.msra.mxu0 0
  %326 = vmatprep.subr.bf16.mxu0 0
  %327 = vmatpush1.bf16.msra.mxu0 0
  %328 = vmatprep.subr.bf16.mxu0 0
  %329 = vmatpush1.bf16.msra.mxu0 0
  %330 = vmatprep.subr.bf16.mxu0 0
  %331 = vmatpush1.bf16.msra.mxu0 0
  %332 = vmatprep.subr.bf16.mxu0 0
  %333 = vmatpush1.bf16.msra.mxu0 0
  %334 = vmatprep.subr.bf16.mxu0 0
  %335 = vmatpush1.bf16.msra.mxu0 0
  %336 = vmatprep.subr.bf16.mxu0 0
  %337 = vmatpush1.bf16.msra.mxu0 0
  %338 = vmatprep.subr.bf16.mxu0 0
  %339 = vmatpush1.bf16.msra.mxu0 0
  %340 = vmatprep.mubr.bf16.mxu0 0
  %341 = vmatmul.mubr.bf16.gmra.mrb[0].mxu0 %v229
  %v342 = vpop.f32.mrb[0].mxu0
  %v343 = vadd.f32 %v258, %v342
  %v344 = vpop.f32.mrb[0].mxu0
  %v345 = vpop.f32.mrb[0].mxu0
  %v346 = vadd.f32 %v258, %v345
  %v347 = vpop.f32.mrb[0].mxu0
  %348 = vmatprep.mubr.bf16.mxu0 0
  %349 = vmatmul.mubr.bf16.gmra.mrb[0].mxu0 %v230
  %v350 = vpop.f32.mrb[0].mxu0
  %v351 = vadd.f32 %v258, %v350
  %v352 = vpop.f32.mrb[0].mxu0
  %v353 = vpop.f32.mrb[0].mxu0
  %v354 = vadd.f32 %v258, %v353
  %v355 = vpop.f32.mrb[0].mxu0
  %356 = vmatprep.mubr.bf16.mxu0 0
  %357 = vmatmul.mubr.bf16.gmra.mrb[0].mxu0 %v231
  %v358 = vpop.f32.mrb[0].mxu0
  %v359 = vadd.f32 %v258, %v358
  %v360 = vpop.f32.mrb[0].mxu0
  %v361 = vpop.f32.mrb[0].mxu0
  %v362 = vadd.f32 %v258, %v361
  %v363 = vpop.f32.mrb[0].mxu0
  %364 = vmatprep.mubr.bf16.mxu0 0
  %365 = vmatmul.mubr.bf16.gmra.mrb[0].mxu0 %v232
  %v366 = vpop.f32.mrb[0].mxu0
  %v367 = vadd.f32 %v258, %v366
  %v368 = vpop.f32.mrb[0].mxu0
  %v369 = vpop.f32.mrb[0].mxu0
  %v370 = vadd.f32 %v258, %v369
  %v371 = vpop.f32.mrb[0].mxu0
  %372 = vmatprep.mubr.bf16.mxu0 0
  %373 = vmatmul.mubr.bf16.gmra.mrb[0].mxu0 %v233
  %v374 = vpop.f32.mrb[0].mxu0
  %v375 = vadd.f32 %v258, %v374
  %v376 = vpop.f32.mrb[0].mxu0
  %v377 = vpop.f32.mrb[0].mxu0
  %v378 = vadd.f32 %v258, %v377
  %v379 = vpop.f32.mrb[0].mxu0
  %380 = vmatprep.mubr.bf16.mxu0 0
  %381 = vmatmul.mubr.bf16.gmra.mrb[0].mxu0 %v234
  %v382 = vpop.f32.mrb[0].mxu0
  %v383 = vadd.f32 %v258, %v382
  %v384 = vpop.f32.mrb[0].mxu0
  %v385 = vpop.f32.mrb[0].mxu0
  %v386 = vadd.f32 %v258, %v385
  %v387 = vpop.f32.mrb[0].mxu0
  %388 = vmatprep.mubr.bf16.mxu0 0
  %389 = vmatmul.mubr.bf16.gmra.mrb[0].mxu0 %v235
  %v390 = vpop.f32.mrb[0].mxu0
  %v391 = vadd.f32 %v258, %v390
  %v392 = vpop.f32.mrb[0].mxu0
  %v393 = vpop.f32.mrb[0].mxu0
  %v394 = vadd.f32 %v258, %v393
  %v395 = vpop.f32.mrb[0].mxu0
  %396 = vmatprep.mubr.bf16.mxu0 0
  %397 = vmatmul.mubr.bf16.gmra.mrb[0].mxu0 %v236
  %v398 = vpop.f32.mrb[0].mxu0
  %v399 = vadd.f32 %v258, %v398
  %v400 = vpop.f32.mrb[0].mxu0
  %v401 = vpop.f32.mrb[0].mxu0
  %v402 = vadd.f32 %v258, %v401
  %v403 = vpop.f32.mrb[0].mxu0
  %404 = vdwg.mxu0
  %v405 = vmul.f32 %v343, 0.01
  %v406 = vmul.f32 %v346, 0.01
  %v407 = vmul.f32 %v351, 0.01
  %v408 = vmul.f32 %v354, 0.01
  %v409 = vmul.f32 %v359, 0.01
  %v410 = vmul.f32 %v362, 0.01
  %v411 = vmul.f32 %v367, 0.01
  %v412 = vmul.f32 %v370, 0.01
  %v413 = vmul.f32 %v375, 0.01
  %v414 = vmul.f32 %v378, 0.01
  %v415 = vmul.f32 %v383, 0.01
  %v416 = vmul.f32 %v386, 0.01
  %v417 = vmul.f32 %v391, 0.01
  %v418 = vmul.f32 %v394, 0.01
  %v419 = vmul.f32 %v399, 0.01
  %v420 = vmul.f32 %v402, 0.01
  %v421 = vmax.f32 %v343, %v405
  %v422 = vmax.f32 %v346, %v406
  %v423 = vmax.f32 %v351, %v407
  %v424 = vmax.f32 %v354, %v408
  %v425 = vmax.f32 %v359, %v409
  %v426 = vmax.f32 %v362, %v410
  %v427 = vmax.f32 %v367, %v411
  %v428 = vmax.f32 %v370, %v412
  %v429 = vmax.f32 %v375, %v413
  %v430 = vmax.f32 %v378, %v414
  %v431 = vmax.f32 %v383, %v415
  %v432 = vmax.f32 %v386, %v416
  %v433 = vmax.f32 %v391, %v417
  %v434 = vmax.f32 %v394, %v418
  %v435 = vmax.f32 %v399, %v419
  %v436 = vmax.f32 %v402, %v420
  %v437 = vld [vmem:[%s5] sm:$0x1]
  %v439 = vlaneseq
  %v440 = vshrl.u32 %v439, 7
  %v441 = vsub.s32 0, %v440
  %v442 = vrot.slane %v437, %v441
  %v444 = vmul.f32 %v421, %v442
  %v445 = vmul.f32 %v422, %v442
  %v446 = vmul.f32 %v423, %v442
  %v447 = vmul.f32 %v424, %v442
  %v448 = vmul.f32 %v425, %v442
  %v449 = vmul.f32 %v426, %v442
  %v450 = vmul.f32 %v427, %v442
  %v451 = vmul.f32 %v428, %v442
  %v452 = vmul.f32 %v429, %v442
  %v453 = vmul.f32 %v430, %v442
  %v454 = vmul.f32 %v431, %v442
  %v455 = vmul.f32 %v432, %v442
  %v456 = vmul.f32 %v433, %v442
  %v457 = vmul.f32 %v434, %v442
  %v458 = vmul.f32 %v435, %v442
  %v459 = vmul.f32 %v436, %v442
  %460 = vadd.xlane.f32.xlu0 %v444
  %v461 = vpop.xlane.xlu0 %460
  %462 = vadd.xlane.f32.xlu0 %v445
  %v463 = vpop.xlane.xlu0 %462
  %464 = vadd.xlane.f32.xlu0 %v446
  %v465 = vpop.xlane.xlu0 %464
  %466 = vadd.xlane.f32.xlu0 %v447
  %v467 = vpop.xlane.xlu0 %466
  %468 = vadd.xlane.f32.xlu0 %v448
  %v469 = vpop.xlane.xlu0 %468
  %470 = vadd.xlane.f32.xlu0 %v449
  %v471 = vpop.xlane.xlu0 %470
  %472 = vadd.xlane.f32.xlu0 %v450
  %v473 = vpop.xlane.xlu0 %472
  %474 = vadd.xlane.f32.xlu0 %v451
  %v475 = vpop.xlane.xlu0 %474
  %476 = vadd.xlane.f32.xlu0 %v452
  %v477 = vpop.xlane.xlu0 %476
  %478 = vadd.xlane.f32.xlu0 %v453
  %v479 = vpop.xlane.xlu0 %478
  %480 = vadd.xlane.f32.xlu0 %v454
  %v481 = vpop.xlane.xlu0 %480
  %482 = vadd.xlane.f32.xlu0 %v455
  %v483 = vpop.xlane.xlu0 %482
  %484 = vadd.xlane.f32.xlu0 %v456
  %v485 = vpop.xlane.xlu0 %484
  %486 = vadd.xlane.f32.xlu0 %v457
  %v487 = vpop.xlane.xlu0 %486
  %488 = vadd.xlane.f32.xlu0 %v458
  %v489 = vpop.xlane.xlu0 %488
  %490 = vadd.xlane.f32.xlu0 %v459
  %v491 = vpop.xlane.xlu0 %490
  %s492 = sld [smem:[#allocation2]]
  %v493 = vstv %s492
  %v494 = vadd.f32 %v461, %v493
  %v495 = vadd.f32 %v463, %v493
  %v496 = vadd.f32 %v465, %v493
  %v497 = vadd.f32 %v467, %v493
  %v498 = vadd.f32 %v469, %v493
  %v499 = vadd.f32 %v471, %v493
  %v500 = vadd.f32 %v473, %v493
  %v501 = vadd.f32 %v475, %v493
  %v502 = vadd.f32 %v477, %v493
  %v503 = vadd.f32 %v479, %v493
  %v504 = vadd.f32 %v481, %v493
  %v505 = vadd.f32 %v483, %v493
  %v506 = vadd.f32 %v485, %v493
  %v507 = vadd.f32 %v487, %v493
  %v508 = vadd.f32 %v489, %v493
  %v509 = vadd.f32 %v491, %v493
  %v526 = vlaneseq
  %v527 = vand.u32 %v526, 127
  %v528 = vlaneseq
  %v529 = vshrl.u32 %v528, 7
  %v530 = vsub.s32 %v527, %v529
  %v531 = vrot.slane %v494, %v530
  %v532 = vadd.s32 %v527, 4294967288
  %v533 = vlaneseq
  %v534 = vshrl.u32 %v533, 7
  %v535 = vsub.s32 %v532, %v534
  %v536 = vrot.slane %v495, %v535
  %vm537 = vcmask 130112
  %v538 = vsel %vm537, %v536, %v531
  %v539 = vadd.s32 %v527, 4294967280
  %v540 = vlaneseq
  %v541 = vshrl.u32 %v540, 7
  %v542 = vsub.s32 %v539, %v541
  %v543 = vrot.slane %v496, %v542
  %vm544 = vcmask 195712
  %v545 = vsel %vm544, %v543, %v538
  %v546 = vadd.s32 %v527, 4294967272
  %v547 = vlaneseq
  %v548 = vshrl.u32 %v547, 7
  %v549 = vsub.s32 %v546, %v548
  %v550 = vrot.slane %v497, %v549
  %vm551 = vcmask 261312
  %v552 = vsel %vm551, %v550, %v545
  %v553 = vadd.s32 %v527, 4294967264
  %v554 = vlaneseq
  %v555 = vshrl.u32 %v554, 7
  %v556 = vsub.s32 %v553, %v555
  %v557 = vrot.slane %v498, %v556
  %vm558 = vcmask 326912
  %v559 = vsel %vm558, %v557, %v552
  %v560 = vadd.s32 %v527, 4294967256
  %v561 = vlaneseq
  %v562 = vshrl.u32 %v561, 7
  %v563 = vsub.s32 %v560, %v562
  %v564 = vrot.slane %v499, %v563
  %vm565 = vcmask 392512
  %v566 = vsel %vm565, %v564, %v559
  %v567 = vadd.s32 %v527, 4294967248
  %v568 = vlaneseq
  %v569 = vshrl.u32 %v568, 7
  %v570 = vsub.s32 %v567, %v569
  %v571 = vrot.slane %v500, %v570
  %vm572 = vcmask 458112
  %v573 = vsel %vm572, %v571, %v566
  %v574 = vadd.s32 %v527, 4294967240
  %v575 = vlaneseq
  %v576 = vshrl.u32 %v575, 7
  %v577 = vsub.s32 %v574, %v576
  %v578 = vrot.slane %v501, %v577
  %vm579 = vcmask 523712
  %v580 = vsel %vm579, %v578, %v573
  %v581 = vadd.s32 %v527, 4294967232
  %v582 = vlaneseq
  %v583 = vshrl.u32 %v582, 7
  %v584 = vsub.s32 %v581, %v583
  %v585 = vrot.slane %v502, %v584
  %vm586 = vcmask 589312
  %v587 = vsel %vm586, %v585, %v580
  %v588 = vadd.s32 %v527, 4294967224
  %v589 = vlaneseq
  %v590 = vshrl.u32 %v589, 7
  %v591 = vsub.s32 %v588, %v590
  %v592 = vrot.slane %v503, %v591
  %vm593 = vcmask 654912
  %v594 = vsel %vm593, %v592, %v587
  %v595 = vadd.s32 %v527, 4294967216
  %v596 = vlaneseq
  %v597 = vshrl.u32 %v596, 7
  %v598 = vsub.s32 %v595, %v597
  %v599 = vrot.slane %v504, %v598
  %vm600 = vcmask 720512
  %v601 = vsel %vm600, %v599, %v594
  %v602 = vadd.s32 %v527, 4294967208
  %v603 = vlaneseq
  %v604 = vshrl.u32 %v603, 7
  %v605 = vsub.s32 %v602, %v604
  %v606 = vrot.slane %v505, %v605
  %vm607 = vcmask 786112
  %v608 = vsel %vm607, %v606, %v601
  %v609 = vadd.s32 %v527, 4294967200
  %v610 = vlaneseq
  %v611 = vshrl.u32 %v610, 7
  %v612 = vsub.s32 %v609, %v611
  %v613 = vrot.slane %v506, %v612
  %vm614 = vcmask 851712
  %v615 = vsel %vm614, %v613, %v608
  %v616 = vadd.s32 %v527, 4294967192
  %v617 = vlaneseq
  %v618 = vshrl.u32 %v617, 7
  %v619 = vsub.s32 %v616, %v618
  %v620 = vrot.slane %v507, %v619
  %vm621 = vcmask 917312
  %v622 = vsel %vm621, %v620, %v615
  %v623 = vadd.s32 %v527, 4294967184
  %v624 = vlaneseq
  %v625 = vshrl.u32 %v624, 7
  %v626 = vsub.s32 %v623, %v625
  %v627 = vrot.slane %v508, %v626
  %vm628 = vcmask 982912
  %v629 = vsel %vm628, %v627, %v622
  %v630 = vadd.s32 %v527, 4294967176
  %v631 = vlaneseq
  %v632 = vshrl.u32 %v631, 7
  %v633 = vsub.s32 %v630, %v632
  %v634 = vrot.slane %v509, %v633
  %vm635 = vcmask 1048512
  %v636 = vsel %vm635, %v634, %v629
  %638 = vst [vmem:[%s7] sm:$0x1] %v636
  // Predicated region
  $region30: #{value_net_forward.1} parent=0 // pred_check
    _
  $region31: #{value_net_forward.1} parent=0 // pred_check_branch
    %640 = sbr.rel (0) target = $region33
  $region32: #{value_net_forward.1} parent=0 // pred_region
    _
  $region33: #{value_net_forward.1} parent=0 // pred_fallthru
    _
  // Predicated region
  $region34: #{value_net_forward.1} parent=0 // pred_check
    _
  $region35: #{value_net_forward.1} parent=0 // pred_check_branch
    %642 = sbr.rel (0) target = $region37
  $region36: #{value_net_forward.1} parent=0 // pred_region
    _
  $region37: #{value_net_forward.1} parent=0 // pred_fallthru
    _

</llo_original>
